<compile_context>
chip_gen: v5e
topology: v5e:2x2
jax: 0.10.0
libtpu: 0.0.40
codegen_flags: <defaults>
</compile_context>

<pallas_src>
import jax
import jax.numpy as jnp
from jax.experimental import pallas as pl
from jax.experimental.pallas import tpu as pltpu  # noqa: F401  (kept for TPU-specific params if scaled up)


def _elementwise_kernel(x_ref, out_ref):
    # x_ref: (rows, 128) f32 in VMEM; out_ref: (8, rows, 128) f32 in VMEM.
    x = x_ref[...]
    out_ref[0] = x + 5.0          # addition
    out_ref[1] = x - 3.0          # subtraction
    out_ref[2] = x * 2.0          # multiplication
    out_ref[3] = x * 0.25         # division by 4 (exact for binary fp)
    out_ref[4] = x * x            # power of 2
    # comparisons emitted as 0.0 / 1.0 f32 (full-width vst; bool cast done outside)
    out_ref[5] = (x > 2.0).astype(jnp.float32)
    out_ref[6] = (x < 10.0).astype(jnp.float32)
    out_ref[7] = (x == 5.0).astype(jnp.float32)


def pt_module_forward(x):
    orig_shape = x.shape
    n = x.size
    lanes = 128
    assert n % lanes == 0, "example sizes chosen so total elements divide 128"
    rows = n // lanes
    x2d = x.reshape(rows, lanes)

    # Single-step kernel: no grid, full arrays resident in VMEM (8 KiB in, 64 KiB out).
    # For non-toy sizes this would switch to a 1-D grid with a VMEM-derived row tile
    # (512+ rows per step), but at this size one step is strictly fastest on
    # v5e / v6e / v7x (and avoids pointless 2-TC sharding on v7x).
    slab = pl.pallas_call(
        _elementwise_kernel,
        out_shape=jax.ShapeDtypeStruct((8, rows, lanes), jnp.float32),
    )(x2d)

    def f(i):
        return slab[i].reshape(orig_shape)

    def b(i):
        return slab[i].reshape(orig_shape).astype(jnp.bool_)

    return {
        'addition': f(0),
        'subtraction': f(1),
        'multiplication': f(2),
        'division': f(3),
        'power': f(4),
        'greater_than': b(5),
        'less_than': b(6),
        'equal_to': b(7),
    }


if __name__ == "__main__":
    key = jax.random.PRNGKey(0)
    x = jax.random.normal(key, (2, 4, 16, 16), dtype=jnp.float32) * 5.0

    out = pt_module_forward(x)
    jax.block_until_ready(out)

    # quick reference check against plain JAX
    ref = {
        'addition': x + 5.0,
        'subtraction': x - 3.0,
        'multiplication': x * 2.0,
        'division': x / 4.0,
        'power': x ** 2,
        'greater_than': x > 2.0,
        'less_than': x < 10.0,
        'equal_to': x == 5.0,
    }
    for k in ref:
        assert out[k].shape == ref[k].shape, k
        assert out[k].dtype == ref[k].dtype, k
        assert jnp.allclose(out[k].astype(jnp.float32),
                            ref[k].astype(jnp.float32), atol=1e-6), k

    print("KERNEL_OK")
</pallas_src>

<mosaic_0001>
module attributes {stable_mosaic.version = 11 : i64} {
  func.func @_elementwise_kernel(%arg0: memref<16x128xf32, #tpu.memory_space<vmem>>, %arg1: memref<8x16x128xf32, #tpu.memory_space<vmem>>) attributes {dimension_semantics = [], scalar_prefetch = 0 : i64, scratch_operands = 0 : i64, tpu.core_type = #tpu.core_type<tc>} {
    %c0 = arith.constant 0 : index
    %c0_0 = arith.constant 0 : index
    %0 = vector.load %arg0[%c0, %c0_0] : memref<16x128xf32, #tpu.memory_space<vmem>>, vector<16x128xf32>
    %cst = arith.constant 5.000000e+00 : f32
    %1 = vector.broadcast %cst : f32 to vector<16x128xf32>
    %2 = arith.addf %0, %1 : vector<16x128xf32>
    %c0_1 = arith.constant 0 : index
    %c0_2 = arith.constant 0 : index
    %c0_3 = arith.constant 0 : index
    %3 = vector.load %arg1[%c0_1, %c0_2, %c0_3] : memref<8x16x128xf32, #tpu.memory_space<vmem>>, vector<1x16x128xf32>
    %4 = vector.shape_cast %3 : vector<1x16x128xf32> to vector<16x128xf32>
    %5 = vector.shape_cast %2 : vector<16x128xf32> to vector<1x16x128xf32>
    tpu.vector_store %arg1[%c0_1, %c0_2, %c0_3], %5 {strides = array<i32>} : memref<8x16x128xf32, #tpu.memory_space<vmem>>, vector<1x16x128xf32>,
    %cst_4 = arith.constant 3.000000e+00 : f32
    %6 = vector.broadcast %cst_4 : f32 to vector<16x128xf32>
    %7 = arith.subf %0, %6 : vector<16x128xf32>
    %c1 = arith.constant 1 : index
    %c0_5 = arith.constant 0 : index
    %c0_6 = arith.constant 0 : index
    %8 = vector.load %arg1[%c1, %c0_5, %c0_6] : memref<8x16x128xf32, #tpu.memory_space<vmem>>, vector<1x16x128xf32>
    %9 = vector.shape_cast %8 : vector<1x16x128xf32> to vector<16x128xf32>
    %10 = vector.shape_cast %7 : vector<16x128xf32> to vector<1x16x128xf32>
    tpu.vector_store %arg1[%c1, %c0_5, %c0_6], %10 {strides = array<i32>} : memref<8x16x128xf32, #tpu.memory_space<vmem>>, vector<1x16x128xf32>,
    %cst_7 = arith.constant 2.000000e+00 : f32
    %11 = vector.broadcast %cst_7 : f32 to vector<16x128xf32>
    %12 = arith.mulf %0, %11 : vector<16x128xf32>
    %c2 = arith.constant 2 : index
    %c0_8 = arith.constant 0 : index
    %c0_9 = arith.constant 0 : index
    %13 = vector.load %arg1[%c2, %c0_8, %c0_9] : memref<8x16x128xf32, #tpu.memory_space<vmem>>, vector<1x16x128xf32>
    %14 = vector.shape_cast %13 : vector<1x16x128xf32> to vector<16x128xf32>
    %15 = vector.shape_cast %12 : vector<16x128xf32> to vector<1x16x128xf32>
    tpu.vector_store %arg1[%c2, %c0_8, %c0_9], %15 {strides = array<i32>} : memref<8x16x128xf32, #tpu.memory_space<vmem>>, vector<1x16x128xf32>,
    %cst_10 = arith.constant 2.500000e-01 : f32
    %16 = vector.broadcast %cst_10 : f32 to vector<16x128xf32>
    %17 = arith.mulf %0, %16 : vector<16x128xf32>
    %c3 = arith.constant 3 : index
    %c0_11 = arith.constant 0 : index
    %c0_12 = arith.constant 0 : index
    %18 = vector.load %arg1[%c3, %c0_11, %c0_12] : memref<8x16x128xf32, #tpu.memory_space<vmem>>, vector<1x16x128xf32>
    %19 = vector.shape_cast %18 : vector<1x16x128xf32> to vector<16x128xf32>
    %20 = vector.shape_cast %17 : vector<16x128xf32> to vector<1x16x128xf32>
    tpu.vector_store %arg1[%c3, %c0_11, %c0_12], %20 {strides = array<i32>} : memref<8x16x128xf32, #tpu.memory_space<vmem>>, vector<1x16x128xf32>,
    %21 = arith.mulf %0, %0 : vector<16x128xf32>
    %c4 = arith.constant 4 : index
    %c0_13 = arith.constant 0 : index
    %c0_14 = arith.constant 0 : index
    %22 = vector.load %arg1[%c4, %c0_13, %c0_14] : memref<8x16x128xf32, #tpu.memory_space<vmem>>, vector<1x16x128xf32>
    %23 = vector.shape_cast %22 : vector<1x16x128xf32> to vector<16x128xf32>
    %24 = vector.shape_cast %21 : vector<16x128xf32> to vector<1x16x128xf32>
    tpu.vector_store %arg1[%c4, %c0_13, %c0_14], %24 {strides = array<i32>} : memref<8x16x128xf32, #tpu.memory_space<vmem>>, vector<1x16x128xf32>,
    %cst_15 = arith.constant 2.000000e+00 : f32
    %25 = vector.broadcast %cst_15 : f32 to vector<16x128xf32>
    %26 = arith.cmpf ogt, %0, %25 : vector<16x128xf32>
    %27 = arith.extui %26 : vector<16x128xi1> to vector<16x128xi32>
    %28 = arith.sitofp %27 : vector<16x128xi32> to vector<16x128xf32>
    %c5 = arith.constant 5 : index
    %c0_16 = arith.constant 0 : index
    %c0_17 = arith.constant 0 : index
    %29 = vector.load %arg1[%c5, %c0_16, %c0_17] : memref<8x16x128xf32, #tpu.memory_space<vmem>>, vector<1x16x128xf32>
    %30 = vector.shape_cast %29 : vector<1x16x128xf32> to vector<16x128xf32>
    %31 = vector.shape_cast %28 : vector<16x128xf32> to vector<1x16x128xf32>
    tpu.vector_store %arg1[%c5, %c0_16, %c0_17], %31 {strides = array<i32>} : memref<8x16x128xf32, #tpu.memory_space<vmem>>, vector<1x16x128xf32>,
    %cst_18 = arith.constant 1.000000e+01 : f32
    %32 = vector.broadcast %cst_18 : f32 to vector<16x128xf32>
    %33 = arith.cmpf olt, %0, %32 : vector<16x128xf32>
    %34 = arith.extui %33 : vector<16x128xi1> to vector<16x128xi32>
    %35 = arith.sitofp %34 : vector<16x128xi32> to vector<16x128xf32>
    %c6 = arith.constant 6 : index
    %c0_19 = arith.constant 0 : index
    %c0_20 = arith.constant 0 : index
    %36 = vector.load %arg1[%c6, %c0_19, %c0_20] : memref<8x16x128xf32, #tpu.memory_space<vmem>>, vector<1x16x128xf32>
    %37 = vector.shape_cast %36 : vector<1x16x128xf32> to vector<16x128xf32>
    %38 = vector.shape_cast %35 : vector<16x128xf32> to vector<1x16x128xf32>
    tpu.vector_store %arg1[%c6, %c0_19, %c0_20], %38 {strides = array<i32>} : memref<8x16x128xf32, #tpu.memory_space<vmem>>, vector<1x16x128xf32>,
    %cst_21 = arith.constant 5.000000e+00 : f32
    %39 = vector.broadcast %cst_21 : f32 to vector<16x128xf32>
    %40 = arith.cmpf oeq, %0, %39 : vector<16x128xf32>
    %41 = arith.extui %40 : vector<16x128xi1> to vector<16x128xi32>
    %42 = arith.sitofp %41 : vector<16x128xi32> to vector<16x128xf32>
    %c7 = arith.constant 7 : index
    %c0_22 = arith.constant 0 : index
    %c0_23 = arith.constant 0 : index
    %43 = vector.load %arg1[%c7, %c0_22, %c0_23] : memref<8x16x128xf32, #tpu.memory_space<vmem>>, vector<1x16x128xf32>
    %44 = vector.shape_cast %43 : vector<1x16x128xf32> to vector<16x128xf32>
    %45 = vector.shape_cast %42 : vector<16x128xf32> to vector<1x16x128xf32>
    tpu.vector_store %arg1[%c7, %c0_22, %c0_23], %45 {strides = array<i32>} : memref<8x16x128xf32, #tpu.memory_space<vmem>>, vector<1x16x128xf32>,
    return
  }
}

</mosaic_0001>

<llo_original>
// kernel: tpu_custom_call.1
$region0: #{tpu_custom_call.1}
  #allocation0 [shape = 'u32[]', space=smem, size = 0x4, offset = 0x4, fixed_abs, tag = 'smem constant byte address 0x4 - core index']
  #allocation1 [shape = 'u32[72,128]{1,0:T(1,128)}', space=vmem, size = 0x9000, scoped, tag = 'internal scratch']
  %s0 = inlined_call_operand.hbm [shape: f32[16,128], index: 0, kind: input, shape index: {}]
  %s1 = inlined_call_operand.hbm [shape: f32[8,16,128], index: 1, kind: output, shape index: {}]
  %s2 = sld [smem:[#allocation0]]
  $region18: #{tpu_custom_call.1} parent=0
    _
  %s4 = ssub.s32 1, %s2
  %s5 = scalar_select 0, %s4, %s2
  $region1: #{tpu_custom_call.1} parent=0
    #allocation2 [shape = 'u8[8192]{0}', space=vmem, size = 0x2000, scoped, tag = 'input window, operand 0, single buffered']
    #allocation3 [shape = 's32[1]{0}', space=sflag, size = 0x4, scoped, tag = 'scoped memory for tpu_custom_call.1']
    #allocation4 [shape = 's32[1]{0}', space=sflag, size = 0x4, scoped, tag = 'scoped memory for tpu_custom_call.1']
    #allocation5 [shape = 'u8[65536]{0}', space=vmem, size = 0x10000, scoped, tag = 'output window, operand 0, single buffered']
    %6 = vsyncpa [#allocation3], 0
    %7 = vsyncpa [#allocation4], 0
    // Predicated region
    $region2: #{tpu_custom_call.1} parent=1 // pred_check
      _
    $region3: #{tpu_custom_call.1} parent=1 // pred_check_branch
      %9 = sbr.rel (0) target = $region5
    $region4: #{tpu_custom_call.1} parent=1 // pred_region
      %11 = vsyncadd [#allocation3], 0
      %s12 = sshll.u32 %s0, 4
      %s13 = int_to_ptr.hbm [resolvable:$true] %s12
      %s14 = sshll.u32 [#allocation2], 4
      %s15 = int_to_ptr.vmem [resolvable:$true] %s14
      %20 = dma.hbm_to_vmem [thread:$0]  %s13, 256, %s15, [#allocation3], 128, 128, 8
    $region5: #{tpu_custom_call.1} parent=1 // pred_fallthru
      _
    // Predicated region
    $region6: #{tpu_custom_call.1} parent=1 // pred_check
      _
    $region7: #{tpu_custom_call.1} parent=1 // pred_check_branch
      %22 = sbr.rel (0) target = $region9
    $region8: #{tpu_custom_call.1} parent=1 // pred_region
      %24 = dma.done [#allocation3], 256
    $region9: #{tpu_custom_call.1} parent=1 // pred_fallthru
      _
    %v25 = vld [vmem:[#allocation2] sm:$0xff]
    %v26 = vld [vmem:[#allocation2 + $0x8] sm:$0xff]
    %v27 = vadd.f32 %v25, 5.0
    %v28 = vadd.f32 %v26, 5.0
    %29 = vst [vmem:[#allocation5] sm:$0xff] %v27
    %30 = vst [vmem:[#allocation5 + $0x8] sm:$0xff] %v28
    %v31 = vsub.f32 %v25, 3.0
    %v32 = vsub.f32 %v26, 3.0
    %s33 = scalar_lea.vmem [#allocation5], 16
    %34 = vst [vmem:[%s33] sm:$0xff] %v31
    %35 = vst [vmem:[%s33 + $0x8] sm:$0xff] %v32
    %v36 = vmul.f32 %v25, 2.0
    %v37 = vmul.f32 %v26, 2.0
    %s38 = scalar_lea.vmem [#allocation5], 32
    %39 = vst [vmem:[%s38] sm:$0xff] %v36
    %40 = vst [vmem:[%s38 + $0x8] sm:$0xff] %v37
    %v41 = vmul.f32 %v25, 0.25
    %v42 = vmul.f32 %v26, 0.25
    %s43 = scalar_lea.vmem [#allocation5], 48
    %44 = vst [vmem:[%s43] sm:$0xff] %v41
    %45 = vst [vmem:[%s43 + $0x8] sm:$0xff] %v42
    %v46 = vmul.f32 %v25, %v25
    %v47 = vmul.f32 %v26, %v26
    %s48 = scalar_lea.vmem [#allocation5], 64
    %49 = vst [vmem:[%s48] sm:$0xff] %v46
    %50 = vst [vmem:[%s48 + $0x8] sm:$0xff] %v47
    %vm51 = vcmp.gt.f32.partialorder %v25, 2.0
    %vm52 = vcmp.gt.f32.partialorder %v26, 2.0
    %v53 = vsel %vm51, 1, 0
    %v54 = vsel %vm52, 1, 0
    %v55 = vcvt.s32.f32 %v53
    %v56 = vcvt.s32.f32 %v54
    %s57 = scalar_lea.vmem [#allocation5], 80
    %58 = vst [vmem:[%s57] sm:$0xff] %v55
    %59 = vst [vmem:[%s57 + $0x8] sm:$0xff] %v56
    %vm60 = vcmp.lt.f32.partialorder %v25, 10.0
    %vm61 = vcmp.lt.f32.partialorder %v26, 10.0
    %v62 = vsel %vm60, 1, 0
    %v63 = vsel %vm61, 1, 0
    %v64 = vcvt.s32.f32 %v62
    %v65 = vcvt.s32.f32 %v63
    %s66 = scalar_lea.vmem [#allocation5], 96
    %67 = vst [vmem:[%s66] sm:$0xff] %v64
    %68 = vst [vmem:[%s66 + $0x8] sm:$0xff] %v65
    %vm69 = vcmp.eq.f32.partialorder %v25, 5.0
    %vm70 = vcmp.eq.f32.partialorder %v26, 5.0
    %v71 = vsel %vm69, 1, 0
    %v72 = vsel %vm70, 1, 0
    %v73 = vcvt.s32.f32 %v71
    %v74 = vcvt.s32.f32 %v72
    %s75 = scalar_lea.vmem [#allocation5], 112
    %76 = vst [vmem:[%s75] sm:$0xff] %v73
    %77 = vst [vmem:[%s75 + $0x8] sm:$0xff] %v74
    // Predicated region
    $region10: #{tpu_custom_call.1} parent=1 // pred_check
      _
    $region11: #{tpu_custom_call.1} parent=1 // pred_check_branch
      %79 = sbr.rel (0) target = $region13
    $region12: #{tpu_custom_call.1} parent=1 // pred_region
      %81 = vsyncadd [#allocation4], 0
      %s82 = sshll.u32 [#allocation5], 4
      %s83 = int_to_ptr.vmem [resolvable:$true] %s82
      %s84 = sshll.u32 %s1, 4
      %s85 = int_to_ptr.hbm [resolvable:$true] %s84
      %90 = dma.vmem_to_hbm [thread:$0]  %s83, 2048, %s85, [#allocation4], 128, 128, 8
    $region13: #{tpu_custom_call.1} parent=1 // pred_fallthru
      _
    // Predicated region
    $region14: #{tpu_custom_call.1} parent=1 // pred_check
      _
    $region15: #{tpu_custom_call.1} parent=1 // pred_check_branch
      %92 = sbr.rel (0) target = $region17
    $region16: #{tpu_custom_call.1} parent=1 // pred_region
      %94 = dma.done [#allocation4], 2048
    $region17: #{tpu_custom_call.1} parent=1 // pred_fallthru
      _
    %95 = vsyncpa [#allocation3], 1
    %96 = vsyncpa [#allocation4], 1

</llo_original>
